<compile_context>
chip_gen: v7x
topology: tpu7x:2x2x1
jax: 0.10.0
libtpu: 0.0.40
codegen_flags: <defaults>
</compile_context>

<pallas_src>
import functools

import jax
import jax.numpy as jnp
from jax import lax
from jax.experimental import pallas as pl
from jax.experimental.pallas import tpu as pltpu


def _glu_kernel(x_ref, w1_ref, v1_ref, w2t_ref, o_ref, acc_ref):
    # x_ref:   [tm, H]      activations
    # w1_ref:  [tf, H]      W1 block (rows of [F, H])
    # v1_ref:  [tf, H]      V1 block
    # w2t_ref: [tf, H]      W2^T block (rows of [F, H])
    # o_ref:   [1, tm, H]   output tile (written once, at the last F block)
    # acc_ref: [tm, H] f32  accumulator carried across the F grid axis
    f = pl.program_id(2)

    @pl.when(f == 0)
    def _():
        acc_ref[...] = jnp.zeros_like(acc_ref)

    x = x_ref[...]
    # A @ B^T (contract both last dims).  W1/V1 stay in native [F, H] layout so
    # their DMA is contiguous.
    # TODO(synk): confirm via pl.lower_as_mlir that this NT contraction does not
    # emit an XLU transpose of the weight tile; if it does, pre-transpose W1/V1.
    nt = (((1,), (1,)), ((), ()))
    g = lax.dot_general(x, w1_ref[...], nt, preferred_element_type=jnp.float32)
    u = lax.dot_general(x, v1_ref[...], nt, preferred_element_type=jnp.float32)
    inter = (g * jax.nn.sigmoid(g) * u).astype(w2t_ref.dtype)   # SiLU(g) * u

    # (gate*up) @ W2^T with W2 pre-transposed -> canonical [M,K]x[K,N] dot.
    acc_ref[...] += jnp.dot(inter, w2t_ref[...],
                            preferred_element_type=jnp.float32)

    @pl.when(f == pl.num_programs(2) - 1)
    def _():
        o_ref[0] = acc_ref[...].astype(o_ref.dtype)


def _vmem_capacity_bytes():
    try:
        return int(pltpu.get_tpu_info().vmem_capacity_bytes)
    except Exception:
        return 64 * 1024 * 1024  # conservative fallback: v7x per-TC VMEM


def _round_up(x, m):
    return ((x + m - 1) // m) * m


def _tf_candidates(F, max_tf):
    """tf candidates: divisors of F; prefer 256-multiples, then 128, then 8."""
    cands = []
    for step in (256, 128, 8):
        t = (min(max_tf, F) // step) * step
        while t >= step:
            if F % t == 0 and t not in cands:
                cands.append(t)
            t -= step
    if not cands:
        cands.append(F)  # last resort (only at tiny / odd shapes)
    return cands


def _vmem_bytes(tm, tf, H, a_it, w_it, o_it):
    weights = 2 * 3 * tf * H * w_it      # double-buffered W1 / V1 / W2^T tiles
    acts = 2 * tm * H * a_it             # double-buffered x tile
    outs = 2 * tm * H * o_it             # double-buffered output tile
    acc = tm * H * 4                     # f32 accumulator scratch
    inter = 4 * tm * tf * 4              # g, u, gate*up, cast intermediates
    return weights + acts + outs + acc + inter


@functools.partial(jax.jit, static_argnames=("tm", "tf", "f_splits"))
def dbrx_expert_glu(x, w1, v1, w2t, *, tm=None, tf=None, f_splits=1):
    """DBRX expert GLU forward.

    x  : [T, H]  activations
    w1 : [F, H]  gate projection weight (nn.Linear layout)
    v1 : [F, H]  up projection weight
    w2t: [F, H]  down projection weight, PRE-TRANSPOSED once at load (= W2.T)
    tm : token tile -- the main arithmetic-intensity knob (~256 v5e, ~384 v7x,
         512-768 v6e).  None -> generation-aware default.
    tf : FFN tile along F.  None -> largest 256-multiple divisor of F fitting
         the VMEM budget.
    f_splits: split the F reduction across a leading "parallel" grid axis
         (partial sums combined outside); useful for v7x decode.
    returns [T, H]
    """
    T, H = x.shape
    F = w1.shape[0]

    a_it = jnp.dtype(x.dtype).itemsize
    w_it = jnp.dtype(w1.dtype).itemsize

    cap = _vmem_capacity_bytes()
    budget = int(cap * 0.8)

    # ---- token tile: multiple of 16, padded T even in the T <= tm branch ----
    if tm is None:
        tm = 512 if cap >= 100 * 1024 * 1024 else 384
    tm = max(16, (int(tm) // 16) * 16)
    tm_eff = min(tm, _round_up(T, 16))
    T_pad = _round_up(T, tm_eff)
    xp = x if T_pad == T else jnp.pad(x, ((0, T_pad - T), (0, 0)))

    f_splits = max(1, int(f_splits))
    o_it = a_it if f_splits == 1 else 4

    # ---- FFN tile: largest preferred divisor of F that fits the VMEM budget --
    if tf is not None and F % int(tf) == 0 and int(tf) % 8 == 0:
        tf_eff = int(tf)
    else:
        want = int(tf) if tf is not None else F
        cands = _tf_candidates(F, want)
        tf_eff = None
        for cand in cands:
            if _vmem_bytes(tm_eff, cand, H, a_it, w_it, o_it) <= budget:
                tf_eff = cand
                break
        if tf_eff is None:
            tf_eff = cands[-1]

    n_f_blocks = F // tf_eff
    f_splits = min(f_splits, n_f_blocks)
    while n_f_blocks % f_splits:
        f_splits -= 1
    nfb = n_f_blocks // f_splits
    o_it = a_it if f_splits == 1 else 4
    out_dtype = x.dtype if f_splits == 1 else jnp.float32

    grid = (f_splits, T_pad // tm_eff, nfb)
    n_token_tiles = T_pad // tm_eff

    vmem_est = _vmem_bytes(tm_eff, tf_eff, H, a_it, w_it, o_it)
    vmem_limit = int(min(budget, max(32 * 1024 * 1024, int(vmem_est * 1.25))))
    vmem_limit = max(vmem_limit, vmem_est)
    vmem_limit = min(vmem_limit, cap)

    cost = pl.CostEstimate(
        flops=6 * T_pad * H * F,
        transcendentals=T_pad * F,
        bytes_accessed=int(n_token_tiles * 3 * F * H * w_it     # weights re-streamed per token tile
                           + f_splits * T_pad * H * a_it        # x reads
                           + f_splits * T_pad * H * o_it),      # output writes
    )

    out = pl.pallas_call(
        _glu_kernel,
        out_shape=jax.ShapeDtypeStruct((f_splits, T_pad, H), out_dtype),
        grid_spec=pltpu.PrefetchScalarGridSpec(
            num_scalar_prefetch=0,
            grid=grid,
            in_specs=[
                pl.BlockSpec((tm_eff, H), lambda s, i, f: (i, 0)),             # x
                pl.BlockSpec((tf_eff, H), lambda s, i, f: (s * nfb + f, 0)),   # W1
                pl.BlockSpec((tf_eff, H), lambda s, i, f: (s * nfb + f, 0)),   # V1
                pl.BlockSpec((tf_eff, H), lambda s, i, f: (s * nfb + f, 0)),   # W2^T
            ],
            out_specs=pl.BlockSpec((1, tm_eff, H), lambda s, i, f: (s, i, 0)),
            scratch_shapes=[pltpu.VMEM((tm_eff, H), jnp.float32)],
        ),
        compiler_params=pltpu.CompilerParams(
            dimension_semantics=("parallel", "parallel", "arbitrary"),
            vmem_limit_bytes=vmem_limit,
        ),
        cost_estimate=cost,
    )(xp, w1, v1, w2t)

    if f_splits == 1:
        res = out[0]
    else:
        res = out.sum(axis=0).astype(x.dtype)
    return res if T_pad == T else res[:T]


if __name__ == "__main__":
    # Small shapes consistent with the module: hidden_size=256, ffn_hidden=512,
    # 40 tokens (exercises token padding and multi-block F accumulation).
    T, H, F = 40, 256, 512

    key = jax.random.PRNGKey(0)
    kx, k1, k2, k3 = jax.random.split(key, 4)
    x = jax.random.normal(kx, (T, H), dtype=jnp.float32)
    # nn.Linear weight layout: [out_features, in_features]
    w1 = jax.random.normal(k1, (F, H), dtype=jnp.float32) * 0.05
    v1 = jax.random.normal(k2, (F, H), dtype=jnp.float32) * 0.05
    w2 = jax.random.normal(k3, (H, F), dtype=jnp.float32) * 0.05
    w2t = jnp.asarray(w2.T)   # one-time, load-time transpose of the down proj

    # Pure-JAX reference (PyTorch semantics: silu(x@W1^T) * (x@V1^T) @ W2^T).
    g_ref = x @ w1.T
    ref = ((g_ref * jax.nn.sigmoid(g_ref)) * (x @ v1.T)) @ w2.T

    # f32 path, small tiles so the (splits, tokens, F) grid and accumulator
    # carry are exercised: grid = (1, 3, 4) with 8 padded token rows.
    out = jax.block_until_ready(dbrx_expert_glu(x, w1, v1, w2t, tm=16, tf=128))
    assert out.shape == (T, H)
    assert jnp.allclose(out, ref, atol=2e-3, rtol=2e-3), "f32 mismatch vs reference"

    # F reduction split across a leading parallel axis (v7x decode pattern):
    # grid = (2, 3, 2), f32 partial sums combined outside the kernel.
    out_sp = jax.block_until_ready(
        dbrx_expert_glu(x, w1, v1, w2t, tm=16, tf=128, f_splits=2))
    assert out_sp.shape == (T, H)
    assert jnp.allclose(out_sp, ref, atol=2e-3, rtol=2e-3), "f_splits mismatch vs reference"

    # bf16 path with auto (generation-aware) tiling: bf16 MXU inputs, f32 acc.
    out_bf16 = jax.block_until_ready(
        dbrx_expert_glu(x.astype(jnp.bfloat16), w1.astype(jnp.bfloat16),
                        v1.astype(jnp.bfloat16), w2t.astype(jnp.bfloat16)))
    assert out_bf16.shape == (T, H)
    assert jnp.allclose(out_bf16.astype(jnp.float32), ref, atol=1e-1, rtol=1e-1), \
        "bf16 mismatch vs reference"

    print("KERNEL_OK")
</pallas_src>

<mosaic_0001>
module attributes {stable_mosaic.version = 11 : i64} {
  func.func @_glu_kernel(%arg0: i32, %arg1: i32, %arg2: i32, %arg3: memref<16x256xf32, #tpu.memory_space<vmem>>, %arg4: memref<128x256xf32, #tpu.memory_space<vmem>>, %arg5: memref<128x256xf32, #tpu.memory_space<vmem>>, %arg6: memref<128x256xf32, #tpu.memory_space<vmem>>, %arg7: memref<1x16x256xf32, #tpu.memory_space<vmem>>, %arg8: memref<16x256xf32, #tpu.memory_space<vmem>>) attributes {dimension_semantics = [#tpu.dimension_semantics<parallel>, #tpu.dimension_semantics<parallel>, #tpu.dimension_semantics<arbitrary>], iteration_bounds = array<i64: 1, 3, 4>, scalar_prefetch = 0 : i64, scratch_operands = 1 : i64, tpu.core_type = #tpu.core_type<tc>, window_params = [{transform_indices = @transform_0, window_bounds = array<i64: 16, 256>}, {transform_indices = @transform_1, window_bounds = array<i64: 128, 256>}, {transform_indices = @transform_2, window_bounds = array<i64: 128, 256>}, {transform_indices = @transform_3, window_bounds = array<i64: 128, 256>}, {transform_indices = @transform_4, window_bounds = array<i64: 1, 16, 256>}]} {
    %c0_i32 = arith.constant 0 : i32
    %0 = arith.cmpi eq, %arg2, %c0_i32 : i32
    %1 = arith.extui %0 : i1 to i32
    %c0_i32_0 = arith.constant 0 : i32
    %2 = arith.cmpi ne, %1, %c0_i32_0 : i32
    scf.if %2 {
      %cst_16 = arith.constant 0.000000e+00 : f32
      %23 = vector.broadcast %cst_16 : f32 to vector<16x256xf32>
      %c0_17 = arith.constant 0 : index
      %c0_18 = arith.constant 0 : index
      %24 = vector.load %arg8[%c0_17, %c0_18] : memref<16x256xf32, #tpu.memory_space<vmem>>, vector<16x256xf32>
      tpu.vector_store %arg8[%c0_17, %c0_18], %23 {strides = array<i32>} : memref<16x256xf32, #tpu.memory_space<vmem>>, vector<16x256xf32>,
    } else {
    }
    %c0 = arith.constant 0 : index
    %c0_1 = arith.constant 0 : index
    %3 = vector.load %arg3[%c0, %c0_1] : memref<16x256xf32, #tpu.memory_space<vmem>>, vector<16x256xf32>
    %c0_2 = arith.constant 0 : index
    %c0_3 = arith.constant 0 : index
    %4 = vector.load %arg4[%c0_2, %c0_3] : memref<128x256xf32, #tpu.memory_space<vmem>>, vector<128x256xf32>
    %cst = arith.constant dense<0.000000e+00> : vector<16x128xf32>
    %5 = tpu.matmul %3, %4, %cst {dimension_numbers = #tpu.dot_dimension_numbers<[1], [1], [0], [0], [0, 0, 1, 0], [], []>} : vector<16x256xf32>, vector<128x256xf32>, vector<16x128xf32> -> vector<16x128xf32>
    %c0_4 = arith.constant 0 : index
    %c0_5 = arith.constant 0 : index
    %6 = vector.load %arg5[%c0_4, %c0_5] : memref<128x256xf32, #tpu.memory_space<vmem>>, vector<128x256xf32>
    %cst_6 = arith.constant dense<0.000000e+00> : vector<16x128xf32>
    %7 = tpu.matmul %3, %6, %cst_6 {dimension_numbers = #tpu.dot_dimension_numbers<[1], [1], [0], [0], [0, 0, 1, 0], [], []>} : vector<16x256xf32>, vector<128x256xf32>, vector<16x128xf32> -> vector<16x128xf32>
    %8 = arith.negf %5 : vector<16x128xf32>
    %9 = math.exp %8 : vector<16x128xf32>
    %cst_7 = arith.constant 1.000000e+00 : f32
    %10 = vector.broadcast %cst_7 : f32 to vector<16x128xf32>
    %11 = arith.addf %10, %9 : vector<16x128xf32>
    %12 = arith.divf %10, %11 : vector<16x128xf32>
    %13 = arith.mulf %5, %12 : vector<16x128xf32>
    %14 = arith.mulf %13, %7 : vector<16x128xf32>
    %c0_8 = arith.constant 0 : index
    %c0_9 = arith.constant 0 : index
    %15 = vector.load %arg8[%c0_8, %c0_9] : memref<16x256xf32, #tpu.memory_space<vmem>>, vector<16x256xf32>
    %c0_10 = arith.constant 0 : index
    %c0_11 = arith.constant 0 : index
    %16 = vector.load %arg6[%c0_10, %c0_11] : memref<128x256xf32, #tpu.memory_space<vmem>>, vector<128x256xf32>
    %cst_12 = arith.constant dense<0.000000e+00> : vector<16x256xf32>
    %17 = tpu.matmul %14, %16, %cst_12 {dimension_numbers = #tpu.dot_dimension_numbers<[1], [0], [0], [1], [0, 0, 1, 1], [], []>} : vector<16x128xf32>, vector<128x256xf32>, vector<16x256xf32> -> vector<16x256xf32>
    %18 = arith.addf %15, %17 : vector<16x256xf32>
    %c0_13 = arith.constant 0 : index
    %c0_14 = arith.constant 0 : index
    %19 = vector.load %arg8[%c0_13, %c0_14] : memref<16x256xf32, #tpu.memory_space<vmem>>, vector<16x256xf32>
    tpu.vector_store %arg8[%c0_13, %c0_14], %18 {strides = array<i32>} : memref<16x256xf32, #tpu.memory_space<vmem>>, vector<16x256xf32>,
    %c3_i32 = arith.constant 3 : i32
    %20 = arith.cmpi eq, %arg2, %c3_i32 : i32
    %21 = arith.extui %20 : i1 to i32
    %c0_i32_15 = arith.constant 0 : i32
    %22 = arith.cmpi ne, %21, %c0_i32_15 : i32
    scf.if %22 {
      %c0_16 = arith.constant 0 : index
      %c0_17 = arith.constant 0 : index
      %23 = vector.load %arg8[%c0_16, %c0_17] : memref<16x256xf32, #tpu.memory_space<vmem>>, vector<16x256xf32>
      %c0_18 = arith.constant 0 : index
      %c0_19 = arith.constant 0 : index
      %c0_20 = arith.constant 0 : index
      %24 = vector.load %arg7[%c0_18, %c0_19, %c0_20] : memref<1x16x256xf32, #tpu.memory_space<vmem>>, vector<1x16x256xf32>
      %25 = vector.shape_cast %24 : vector<1x16x256xf32> to vector<16x256xf32>
      %26 = vector.shape_cast %23 : vector<16x256xf32> to vector<1x16x256xf32>
      tpu.vector_store %arg7[%c0_18, %c0_19, %c0_20], %26 {strides = array<i32>} : memref<1x16x256xf32, #tpu.memory_space<vmem>>, vector<1x16x256xf32>,
    } else {
    }
    return
  }
  func.func @transform_0(%arg0: i32, %arg1: i32, %arg2: i32) -> (i32, i32) {
    %c0_i32 = arith.constant 0 : i32
    %c0_i32_0 = arith.constant 0 : i32
    return %arg1, %c0_i32 : i32, i32
  }
  func.func @transform_1(%arg0: i32, %arg1: i32, %arg2: i32) -> (i32, i32) {
    %c4_i32 = arith.constant 4 : i32
    %0 = arith.muli %arg0, %c4_i32 : i32
    %1 = arith.addi %0, %arg2 : i32
    %c0_i32 = arith.constant 0 : i32
    %c0_i32_0 = arith.constant 0 : i32
    return %1, %c0_i32 : i32, i32
  }
  func.func @transform_2(%arg0: i32, %arg1: i32, %arg2: i32) -> (i32, i32) {
    %c4_i32 = arith.constant 4 : i32
    %0 = arith.muli %arg0, %c4_i32 : i32
    %1 = arith.addi %0, %arg2 : i32
    %c0_i32 = arith.constant 0 : i32
    %c0_i32_0 = arith.constant 0 : i32
    return %1, %c0_i32 : i32, i32
  }
  func.func @transform_3(%arg0: i32, %arg1: i32, %arg2: i32) -> (i32, i32) {
    %c4_i32 = arith.constant 4 : i32
    %0 = arith.muli %arg0, %c4_i32 : i32
    %1 = arith.addi %0, %arg2 : i32
    %c0_i32 = arith.constant 0 : i32
    %c0_i32_0 = arith.constant 0 : i32
    return %1, %c0_i32 : i32, i32
  }
  func.func @transform_4(%arg0: i32, %arg1: i32, %arg2: i32) -> (i32, i32, i32) {
    %c0_i32 = arith.constant 0 : i32
    %c0_i32_0 = arith.constant 0 : i32
    return %arg0, %arg1, %c0_i32 : i32, i32, i32
  }
}

</mosaic_0001>

<llo_original>
// kernel: dbrx_expert_glu.1
$region0: #{dbrx_expert_glu.1}
  #allocation0 [shape = 'u32[]', space=smem, size = 0x4, offset = 0x4, fixed_abs, tag = 'smem constant byte address 0x4 - core index']
  #allocation1 [shape = 'u32[144,128]{1,0:T(1,128)}', space=vmem, size = 0x12000, scoped, tag = 'internal scratch']
  #allocation2 [shape = 'f32[16,256]{1,0:T(8,128)}', space=vmem, size = 0x4000, scoped, tag = 'scratch operand']
  %s0 = inlined_call_operand.vmem [shape: f32[48,256], index: 0, kind: input, shape index: {}]
  %s1 = inlined_call_operand.hbm [shape: f32[512,256], index: 1, kind: input, shape index: {}]
  %s2 = inlined_call_operand.hbm [shape: f32[512,256], index: 2, kind: input, shape index: {}]
  %s3 = inlined_call_operand.hbm [shape: f32[512,256], index: 3, kind: input, shape index: {}]
  %s4 = inlined_call_operand.vmem [shape: f32[1,48,256], index: 4, kind: output, shape index: {}]
  %s5 = sld [smem:[#allocation0]]
  $region69: #{dbrx_expert_glu.1} parent=0
    _
  %s7 = ssub.s32 1, %s5
  %s8 = scalar_select 0, %s7, %s5
  $region1: #{dbrx_expert_glu.1} parent=0
    #allocation3 [shape = 'u8[262144]{0}', space=vmem, size = 0x40000, scoped, tag = 'input window, operand 1']
    #allocation4 [shape = 's32[2]{0}', space=sflag, size = 0x8, scoped, tag = 'scoped memory for dbrx_expert_glu.1']
    #allocation5 [shape = 'u8[262144]{0}', space=vmem, size = 0x40000, scoped, tag = 'input window, operand 2']
    #allocation6 [shape = 's32[2]{0}', space=sflag, size = 0x8, scoped, tag = 'scoped memory for dbrx_expert_glu.1']
    #allocation7 [shape = 'u8[262144]{0}', space=vmem, size = 0x40000, scoped, tag = 'input window, operand 3']
    %9 = vsyncpa [#allocation4], 0
    %s10 = scalar_lea.sflag [#allocation4], 1
    %11 = vsyncpa %s10, 0
    %12 = vsyncpa [#allocation6], 0
    %s13 = scalar_lea.sflag [#allocation6], 1
    %14 = vsyncpa %s13, 0
    loop: start=0, step=1, limit=14
    $region2: #{dbrx_expert_glu.1} parent=1 // loop_pre_header
      _
    $region3: #{dbrx_expert_glu.1} parent=1 // loop_header
      %s16 = sphi 0, %s20
      %p17 = scmp.ge.s32.totalorder %s16, 14
      %s23 = sphi 0, %s42
      %s24 = sphi 0, %s38
      %s25 = sphi 0, %s34
      %s26 = sphi 0, %s23
      %s27 = sphi 0, %s24
      %s28 = sphi 0, %s25
      %s29 = sphi 0, %s26
      %s30 = sphi 0, %s27
      %s31 = sphi 0, %s28
      %s45 = sphi 0, %s47
      %s48 = sphi 0, %s45
      %s49 = sphi 0, %s48
      %s65 = sphi 0, %s49
      %s75 = sphi 0, %s77
      %s78 = sphi 0, %s75
      %s79 = sphi 0, %s78
      %s95 = sphi 0, %s79
      %s105 = sphi 0, %s107
      %s108 = sphi 0, %s105
      %s109 = sphi 0, %s108
      %s125 = sphi 0, %s109
      %s135 = sphi 0, %s137
      %s138 = sphi 0, %s135
      %s139 = sphi 0, %s138
      %s155 = sphi 0, %s139
      %s163 = sphi 0, %s165
      %s166 = sphi 0, %s163
      %s167 = sphi 0, %s166
      %s183 = sphi 0, %s167
    $region4: #{dbrx_expert_glu.1} parent=1 // loop_header_branch
      %19 = sbr.rel (%p17) target = $region8
    $region5: #{dbrx_expert_glu.1} parent=1 // loop_body
      %s21 = ssub.s32 %s16, 1
      %s22 = ssub.s32 %s16, 2
      %s32 = sadd.s32 1, %s25
      %p33 = scmp.ge.s32.totalorder %s32, 4
      %s34 = scalar_select %p33, 0, %s32
      %s35 = sadd.s32 1, %s24
      %s36 = scalar_select %p33, %s35, %s24
      %p37 = scmp.ge.s32.totalorder %s36, 3
      %s38 = scalar_select %p37, 0, %s36
      %s39 = sadd.s32 1, %s23
      %s40 = scalar_select %p37, %s39, %s23
      %p41 = scmp.ge.s32.totalorder %s40, 1
      %s42 = scalar_select %p41, 0, %s40
      %s43 = ssub.s32 %s24, %s38
      %p44 = scmp.eq.s32.totalorder %s43, 0
      %s46 = sadd.s32 %s45, 1
      %s47 = scalar_select %p44, %s45, %s46
      %p50 = pneg %p44
      %p51 = scmp.eq.s32.totalorder %s16, 11
      %p52 = por %p50, %p51
      %p53 = scmp.ne.s32.totalorder %s45, %s48
      %p54 = scmp.eq.s32.totalorder %s16, 0
      %p55 = por %p53, %p54
      %p56 = scmp.ne.s32.totalorder %s45, %s48
      %p57 = scmp.eq.s32.totalorder %s21, 11
      %p58 = por %p56, %p57
      %p59 = scmp.ne.s32.totalorder %s48, %s49
      %p60 = scmp.eq.s32.totalorder %s21, 0
      %p61 = por %p59, %p60
      %p62 = scmp.ne.s32.totalorder %s48, %s49
      %p63 = scmp.eq.s32.totalorder %s22, 11
      %p64 = por %p62, %p63
      %p66 = scmp.ne.s32.totalorder %s49, %s65
      %p67 = scmp.eq.s32.totalorder %s22, 0
      %p68 = por %p66, %p67
      %s69 = smul.u32 %s23, 4
      %s70 = sadd.s32 %s69, %s25
      %s71 = smul.u32 %s42, 4
      %s72 = sadd.s32 %s71, %s34
      %s73 = ssub.s32 %s70, %s72
      %p74 = scmp.eq.s32.totalorder %s73, 0
      %s76 = sadd.s32 %s75, 1
      %s77 = scalar_select %p74, %s75, %s76
      %p80 = pneg %p74
      %p81 = scmp.eq.s32.totalorder %s16, 11
      %p82 = por %p80, %p81
      %p83 = scmp.ne.s32.totalorder %s75, %s78
      %p84 = scmp.eq.s32.totalorder %s16, 0
      %p85 = por %p83, %p84
      %p86 = scmp.ne.s32.totalorder %s75, %s78
      %p87 = scmp.eq.s32.totalorder %s21, 11
      %p88 = por %p86, %p87
      %p89 = scmp.ne.s32.totalorder %s78, %s79
      %p90 = scmp.eq.s32.totalorder %s21, 0
      %p91 = por %p89, %p90
      %p92 = scmp.ne.s32.totalorder %s78, %s79
      %p93 = scmp.eq.s32.totalorder %s22, 11
      %p94 = por %p92, %p93
      %p96 = scmp.ne.s32.totalorder %s79, %s95
      %p97 = scmp.eq.s32.totalorder %s22, 0
      %p98 = por %p96, %p97
      %s99 = smul.u32 %s23, 4
      %s100 = sadd.s32 %s99, %s25
      %s101 = smul.u32 %s42, 4
      %s102 = sadd.s32 %s101, %s34
      %s103 = ssub.s32 %s100, %s102
      %p104 = scmp.eq.s32.totalorder %s103, 0
      %s106 = sadd.s32 %s105, 1
      %s107 = scalar_select %p104, %s105, %s106
      %p110 = pneg %p104
      %p111 = scmp.eq.s32.totalorder %s16, 11
      %p112 = por %p110, %p111
      %p113 = scmp.ne.s32.totalorder %s105, %s108
      %p114 = scmp.eq.s32.totalorder %s16, 0
      %p115 = por %p113, %p114
      %p116 = scmp.ne.s32.totalorder %s105, %s108
      %p117 = scmp.eq.s32.totalorder %s21, 11
      %p118 = por %p116, %p117
      %p119 = scmp.ne.s32.totalorder %s108, %s109
      %p120 = scmp.eq.s32.totalorder %s21, 0
      %p121 = por %p119, %p120
      %p122 = scmp.ne.s32.totalorder %s108, %s109
      %p123 = scmp.eq.s32.totalorder %s22, 11
      %p124 = por %p122, %p123
      %p126 = scmp.ne.s32.totalorder %s109, %s125
      %p127 = scmp.eq.s32.totalorder %s22, 0
      %p128 = por %p126, %p127
      %s129 = smul.u32 %s23, 4
      %s130 = sadd.s32 %s129, %s25
      %s131 = smul.u32 %s42, 4
      %s132 = sadd.s32 %s131, %s34
      %s133 = ssub.s32 %s130, %s132
      %p134 = scmp.eq.s32.totalorder %s133, 0
      %s136 = sadd.s32 %s135, 1
      %s137 = scalar_select %p134, %s135, %s136
      %p140 = pneg %p134
      %p141 = scmp.eq.s32.totalorder %s16, 11
      %p142 = por %p140, %p141
      %p143 = scmp.ne.s32.totalorder %s135, %s138
      %p144 = scmp.eq.s32.totalorder %s16, 0
      %p145 = por %p143, %p144
      %p146 = scmp.ne.s32.totalorder %s135, %s138
      %p147 = scmp.eq.s32.totalorder %s21, 11
      %p148 = por %p146, %p147
      %p149 = scmp.ne.s32.totalorder %s138, %s139
      %p150 = scmp.eq.s32.totalorder %s21, 0
      %p151 = por %p149, %p150
      %p152 = scmp.ne.s32.totalorder %s138, %s139
      %p153 = scmp.eq.s32.totalorder %s22, 11
      %p154 = por %p152, %p153
      %p156 = scmp.ne.s32.totalorder %s139, %s155
      %p157 = scmp.eq.s32.totalorder %s22, 0
      %p158 = por %p156, %p157
      %s159 = ssub.s32 %s23, %s42
      %s160 = ssub.s32 %s24, %s38
      %s161 = sor.u32 %s159, %s160
      %p162 = scmp.eq.s32.totalorder %s161, 0
      %s164 = sadd.s32 %s163, 1
      %s165 = scalar_select %p162, %s163, %s164
      %p168 = pneg %p162
      %p169 = scmp.eq.s32.totalorder %s16, 11
      %p170 = por %p168, %p169
      %p171 = scmp.ne.s32.totalorder %s163, %s166
      %p172 = scmp.eq.s32.totalorder %s16, 0
      %p173 = por %p171, %p172
      %p174 = scmp.ne.s32.totalorder %s163, %s166
      %p175 = scmp.eq.s32.totalorder %s21, 11
      %p176 = por %p174, %p175
      %p177 = scmp.ne.s32.totalorder %s166, %s167
      %p178 = scmp.eq.s32.totalorder %s21, 0
      %p179 = por %p177, %p178
      %p180 = scmp.ne.s32.totalorder %s166, %s167
      %p181 = scmp.eq.s32.totalorder %s22, 11
      %p182 = por %p180, %p181
      %p184 = scmp.ne.s32.totalorder %s167, %s183
      %p185 = scmp.eq.s32.totalorder %s22, 0
      %p186 = por %p184, %p185
      %p187 = scmp.le.s32.totalorder 1, %s16
      %p188 = scmp.lt.s32.totalorder %s16, 13
      %p189 = pnand %p187, %p188
      %p190 = pneg %p189
      // Predicated region
      $region9: #{dbrx_expert_glu.1} parent=5 // pred_check
        _
      $region10: #{dbrx_expert_glu.1} parent=5 // pred_check_branch
        %192 = sbr.rel (%p189) target = $region12
      $region11: #{dbrx_expert_glu.1} parent=5 // pred_region
        %s193 = ssub.s32 %s16, 1
      $region12: #{dbrx_expert_glu.1} parent=5 // pred_fallthru
        _
      %p194 = scmp.lt.s32.totalorder %s16, 12
      // Predicated region
      $region13: #{dbrx_expert_glu.1} parent=5 // pred_check
        %p195 = pneg %p194
      $region14: #{dbrx_expert_glu.1} parent=5 // pred_check_branch
        %197 = sbr.rel (%p195) target = $region16
      $region15: #{dbrx_expert_glu.1} parent=5 // pred_region
        // Predicated region
        $region17: #{dbrx_expert_glu.1} parent=15 // pred_check
          %p198 = pneg %p55
        $region18: #{dbrx_expert_glu.1} parent=15 // pred_check_branch
          %200 = sbr.rel (%p198) target = $region20
        $region19: #{dbrx_expert_glu.1} parent=15 // pred_region
          %s201 = smul.u32 2, %s24
          %p202 = scmp.lt.s32.totalorder %s201, 5
          %s203 = scalar_select %p202, %s201, 5
          %s204 = smul.addr %s203, 2
          %s205 = smul.addr %s204, 8
          %s206 = scalar_lea.vmem %s0, %s205
          %s207 = smul.u32 2, %s24
        $region20: #{dbrx_expert_glu.1} parent=15 // pred_fallthru
          _
        // Predicated region
        $region21: #{dbrx_expert_glu.1} parent=15 // pred_check
          %p208 = pneg %p85
        $region22: #{dbrx_expert_glu.1} parent=15 // pred_check_branch
          %210 = sbr.rel (%p208) target = $region24
        $region23: #{dbrx_expert_glu.1} parent=15 // pred_region
          %s211 = sand.u32 %s75, 1
          %s212 = scalar_lea.sflag [#allocation4], %s211
          %s213 = sand.u32 %s75, 1
          %s214 = smul.addr %s213, 256
          %s215 = scalar_lea.vmem [#allocation3], %s214
          %s216 = smul.u32 %s23, 4
          %s217 = sadd.s32 %s216, %s25
          %s218 = smul.u32 16, %s217
          %s220 = ssub.s32 4096, 4096
          %221 = vsyncadd %s212, %s220
          %s222 = smul.addr %s218, 2
          %s223 = smul.addr %s222, 128
          %s224 = scalar_lea.hbm %s1, %s223
          %s225 = sshll.u32 %s215, 4
          %s226 = int_to_ptr.vmem [resolvable:$true] %s225
          %231 = dma.hbm_to_vmem [thread:$0]  %s224, 4096, %s226, %s212, 256, 256, 16
        $region24: #{dbrx_expert_glu.1} parent=15 // pred_fallthru
          _
        // Predicated region
        $region25: #{dbrx_expert_glu.1} parent=15 // pred_check
          %p232 = pneg %p115
        $region26: #{dbrx_expert_glu.1} parent=15 // pred_check_branch
          %234 = sbr.rel (%p232) target = $region28
        $region27: #{dbrx_expert_glu.1} parent=15 // pred_region
          %s235 = sand.u32 %s16, 1
          %s236 = scalar_lea.sflag [#allocation6], %s235
          %s237 = sand.u32 %s105, 1
          %s238 = smul.addr %s237, 256
          %s239 = scalar_lea.vmem [#allocation5], %s238
          %s240 = smul.u32 %s23, 4
          %s241 = sadd.s32 %s240, %s25
          %s242 = smul.u32 16, %s241
          %s244 = ssub.s32 4096, 4096
          %245 = vsyncadd %s236, %s244
          %s246 = smul.addr %s242, 2
          %s247 = smul.addr %s246, 128
          %s248 = scalar_lea.hbm %s2, %s247
          %s249 = sshll.u32 %s239, 4
          %s250 = int_to_ptr.vmem [resolvable:$true] %s249
          %255 = dma.hbm_to_vmem [thread:$0]  %s248, 4096, %s250, %s236, 256, 256, 16
        $region28: #{dbrx_expert_glu.1} parent=15 // pred_fallthru
          _
        // Predicated region
        $region29: #{dbrx_expert_glu.1} parent=15 // pred_check
          %p256 = pneg %p145
        $region30: #{dbrx_expert_glu.1} parent=15 // pred_check_branch
          %258 = sbr.rel (%p256) target = $region32
        $region31: #{dbrx_expert_glu.1} parent=15 // pred_region
          %s259 = sand.u32 %s16, 1
          %s260 = scalar_lea.sflag [#allocation6], %s259
          %s261 = sand.u32 %s135, 1
          %s262 = smul.addr %s261, 256
          %s263 = scalar_lea.vmem [#allocation7], %s262
          %s264 = smul.u32 %s23, 4
          %s265 = sadd.s32 %s264, %s25
          %s266 = smul.u32 16, %s265
          %s268 = ssub.s32 4096, 4096
          %269 = vsyncadd %s260, %s268
          %s270 = smul.addr %s266, 2
          %s271 = smul.addr %s270, 128
          %s272 = scalar_lea.hbm %s3, %s271
          %s273 = sshll.u32 %s263, 4
          %s274 = int_to_ptr.vmem [resolvable:$true] %s273
          %279 = dma.hbm_to_vmem [thread:$0]  %s272, 4096, %s274, %s260, 256, 256, 16
        $region32: #{dbrx_expert_glu.1} parent=15 // pred_fallthru
          _
      $region16: #{dbrx_expert_glu.1} parent=5 // pred_fallthru
        _
      %p280 = scmp.le.s32.totalorder 1, %s16
      %p281 = scmp.lt.s32.totalorder %s16, 13
      %p282 = pnand %p280, %p281
      %p283 = pneg %p282
      // Predicated region
      $region33: #{dbrx_expert_glu.1} parent=5 // pred_check
        _
      $region34: #{dbrx_expert_glu.1} parent=5 // pred_check_branch
        %285 = sbr.rel (%p282) target = $region36
      $region35: #{dbrx_expert_glu.1} parent=5 // pred_region
        %s286 = ssub.s32 %s16, 1
        %s287 = sand.u32 %s78, 1
        %s288 = scalar_lea.sflag [#allocation4], %s287
        %s289 = sand.u32 %s78, 1
        %s290 = smul.addr %s289, 256
        %s291 = scalar_lea.vmem [#allocation3], %s290
        // Predicated region
        $region37: #{dbrx_expert_glu.1} parent=35 // pred_check
          %p292 = pneg %p91
        $region38: #{dbrx_expert_glu.1} parent=35 // pred_check_branch
          %294 = sbr.rel (%p292) target = $region40
        $region39: #{dbrx_expert_glu.1} parent=35 // pred_region
          %295 = dma.done %s288, 4096
        $region40: #{dbrx_expert_glu.1} parent=35 // pred_fallthru
          _
        %s296 = sand.u32 %s21, 1
        %s297 = scalar_lea.sflag [#allocation6], %s296
        %s298 = sand.u32 %s108, 1
        %s299 = smul.addr %s298, 256
        %s300 = scalar_lea.vmem [#allocation5], %s299
        // Predicated region
        $region41: #{dbrx_expert_glu.1} parent=35 // pred_check
          %p301 = pneg %p121
        $region42: #{dbrx_expert_glu.1} parent=35 // pred_check_branch
          %303 = sbr.rel (%p301) target = $region44
        $region43: #{dbrx_expert_glu.1} parent=35 // pred_region
          %304 = dma.done %s297, 4096
        $region44: #{dbrx_expert_glu.1} parent=35 // pred_fallthru
          _
        %s305 = sand.u32 %s21, 1
        %s306 = scalar_lea.sflag [#allocation6], %s305
        %s307 = sand.u32 %s138, 1
        %s308 = smul.addr %s307, 256
        %s309 = scalar_lea.vmem [#allocation7], %s308
        // Predicated region
        $region45: #{dbrx_expert_glu.1} parent=35 // pred_check
          %p310 = pneg %p151
        $region46: #{dbrx_expert_glu.1} parent=35 // pred_check_branch
          %312 = sbr.rel (%p310) target = $region48
        $region47: #{dbrx_expert_glu.1} parent=35 // pred_region
          %313 = dma.done %s306, 4096
        $region48: #{dbrx_expert_glu.1} parent=35 // pred_fallthru
          _
        %s314 = smul.u32 2, %s27
        %p315 = scmp.lt.s32.totalorder %s314, 5
        %s316 = scalar_select %p315, %s314, 5
        %s317 = smul.addr %s316, 2
        %s318 = smul.addr %s317, 8
        %s319 = scalar_lea.vmem %s0, %s318
        %p320 = pneg %p61
        %p321 = pneg %p58
        %s322 = sand.u32 %s78, 1
        %s323 = scalar_lea.sflag [#allocation4], %s322
        %s324 = sand.u32 %s78, 1
        %s325 = smul.addr %s324, 256
        %s326 = scalar_lea.vmem [#allocation3], %s325
        %p327 = pneg %p91
        %p328 = pneg %p88
        %s329 = sand.u32 %s21, 1
        %s330 = scalar_lea.sflag [#allocation6], %s329
        %s331 = sand.u32 %s108, 1
        %s332 = smul.addr %s331, 256
        %s333 = scalar_lea.vmem [#allocation5], %s332
        %p334 = pneg %p121
        %p335 = pneg %p118
        %s336 = sand.u32 %s21, 1
        %s337 = scalar_lea.sflag [#allocation6], %s336
        %s338 = sand.u32 %s138, 1
        %s339 = smul.addr %s338, 256
        %s340 = scalar_lea.vmem [#allocation7], %s339
        %p341 = pneg %p151
        %p342 = pneg %p148
        %p343 = pneg %p179
        %p344 = pneg %p176
        %s345 = smul.u32 2, %s27
        %p346 = scmp.lt.s32.totalorder %s26, 0
        %s347 = scalar_select %p346, %s26, 0
        %p348 = scmp.lt.s32.totalorder %s345, 5
        %s349 = scalar_select %p348, %s345, 5
        %s350 = smul.addr %s349, 2
        %s351 = smul.addr %s347, 12
        %s352 = sadd.s32 %s350, %s351
        %s353 = smul.addr %s352, 8
        %s354 = scalar_lea.vmem %s4, %s353
        %s355 = smul.u32 2, %s27
        %p356 = scmp.lt.s32.totalorder %s355, 5
        %s357 = scalar_select %p356, %s355, 5
        %s358 = smul.addr %s357, 2
        %s359 = smul.addr %s358, 8
        %s360 = scalar_lea.vmem %s0, %s359
        %s361 = smul.u32 2, %s27
        %s362 = smul.u32 %s26, 4
        %s363 = sadd.s32 %s362, %s28
        %s364 = smul.u32 16, %s363
        %s365 = smul.u32 %s26, 4
        %s366 = sadd.s32 %s365, %s28
        %s367 = smul.u32 16, %s366
        %s368 = smul.u32 %s26, 4
        %s369 = sadd.s32 %s368, %s28
        %s370 = smul.u32 16, %s369
        %s371 = smul.u32 2, %s27
        %p372 = scmp.lt.s32.totalorder %s26, 0
        %s373 = scalar_select %p372, %s26, 0
        %p374 = scmp.lt.s32.totalorder %s371, 5
        %s375 = scalar_select %p374, %s371, 5
        %s376 = smul.addr %s375, 2
        %s377 = smul.addr %s373, 12
        %s378 = sadd.s32 %s376, %s377
        %s379 = smul.addr %s378, 8
        %s380 = scalar_lea.vmem %s4, %s379
        %s381 = smul.u32 2, %s27
        %p382 = scmp.eq.s32.totalorder %s28, 0
        // Predicated region
        $region49: #{dbrx_expert_glu.1} parent=35 // pred_check
          %p383 = pneg %p382
        $region50: #{dbrx_expert_glu.1} parent=35 // pred_check_branch
          %385 = sbr.rel (%p383) target = $region52
        $region51: #{dbrx_expert_glu.1} parent=35 // pred_region
          %386 = vst [vmem:[#allocation2] sm:$0xff] 0.0
          %387 = vst [vmem:[#allocation2 + $0x8] sm:$0xff] 0.0
          %388 = vst [vmem:[#allocation2 + $0x10] sm:$0xff] 0.0
          %389 = vst [vmem:[#allocation2 + $0x18] sm:$0xff] 0.0
        $region52: #{dbrx_expert_glu.1} parent=35 // pred_fallthru
          _
        %v390 = vld [vmem:[%s360] sm:$0xff]
        %v391 = vld [vmem:[%s360 + $0x8] sm:$0xff]
        %v392 = vld [vmem:[%s360 + $0x10] sm:$0xff]
        %v393 = vld [vmem:[%s360 + $0x18] sm:$0xff]
        %v394 = vld [vmem:[%s291] sm:$0xff]
        %v395 = vld [vmem:[%s291 + $0x8] sm:$0xff]
        %v396 = vld [vmem:[%s291 + $0x10] sm:$0xff]
        %v397 = vld [vmem:[%s291 + $0x18] sm:$0xff]
        %v398 = vld [vmem:[%s291 + $0x20] sm:$0xff]
        %v399 = vld [vmem:[%s291 + $0x28] sm:$0xff]
        %v400 = vld [vmem:[%s291 + $0x30] sm:$0xff]
        %v401 = vld [vmem:[%s291 + $0x38] sm:$0xff]
        %v402 = vld [vmem:[%s291 + $0x40] sm:$0xff]
        %v403 = vld [vmem:[%s291 + $0x48] sm:$0xff]
        %v404 = vld [vmem:[%s291 + $0x50] sm:$0xff]
        %v405 = vld [vmem:[%s291 + $0x58] sm:$0xff]
        %v406 = vld [vmem:[%s291 + $0x60] sm:$0xff]
        %v407 = vld [vmem:[%s291 + $0x68] sm:$0xff]
        %v408 = vld [vmem:[%s291 + $0x70] sm:$0xff]
        %v409 = vld [vmem:[%s291 + $0x78] sm:$0xff]
        %v410 = vld [vmem:[%s291 + $0x80] sm:$0xff]
        %v411 = vld [vmem:[%s291 + $0x88] sm:$0xff]
        %v412 = vld [vmem:[%s291 + $0x90] sm:$0xff]
        %v413 = vld [vmem:[%s291 + $0x98] sm:$0xff]
        %v414 = vld [vmem:[%s291 + $0xa0] sm:$0xff]
        %v415 = vld [vmem:[%s291 + $0xa8] sm:$0xff]
        %v416 = vld [vmem:[%s291 + $0xb0] sm:$0xff]
        %v417 = vld [vmem:[%s291 + $0xb8] sm:$0xff]
        %v418 = vld [vmem:[%s291 + $0xc0] sm:$0xff]
        %v419 = vld [vmem:[%s291 + $0xc8] sm:$0xff]
        %v420 = vld [vmem:[%s291 + $0xd0] sm:$0xff]
        %v421 = vld [vmem:[%s291 + $0xd8] sm:$0xff]
        %v422 = vld [vmem:[%s291 + $0xe0] sm:$0xff]
        %v423 = vld [vmem:[%s291 + $0xe8] sm:$0xff]
        %v424 = vld [vmem:[%s291 + $0xf0] sm:$0xff]
        %v425 = vld [vmem:[%s291 + $0xf8] sm:$0xff]
        %426 = vmatprep.subr.mxu0 %v395
        %427 = vmatpush1.xpose.msra.mxu0 %v394
        %428 = vmatprep.subr.mxu0 %v397
        %429 = vmatpush1.xpose.msra.mxu0 %v396
        %430 = vmatprep.subr.mxu0 %v399
        %431 = vmatpush1.xpose.msra.mxu0 %v398
        %432 = vmatprep.subr.mxu0 %v401
        %433 = vmatpush1.xpose.msra.mxu0 %v400
        %434 = vmatprep.subr.mxu0 %v403
        %435 = vmatpush1.xpose.msra.mxu0 %v402
        %436 = vmatprep.subr.mxu0 %v405
        %437 = vmatpush1.xpose.msra.mxu0 %v404
        %438 = vmatprep.subr.mxu0 %v407
        %439 = vmatpush1.xpose.msra.mxu0 %v406
        %440 = vmatprep.subr.mxu0 %v409
        %441 = vmatpush1.xpose.msra.mxu0 %v408
        %442 = vmatprep.subr.mxu0 %v411
        %443 = vmatpush1.xpose.msra.mxu0 %v410
        %444 = vmatprep.subr.mxu0 %v413
        %445 = vmatpush1.xpose.msra.mxu0 %v412
        %446 = vmatprep.subr.mxu0 %v415
        %447 = vmatpush1.xpose.msra.mxu0 %v414
        %448 = vmatprep.subr.mxu0 %v417
        %449 = vmatpush1.xpose.msra.mxu0 %v416
        %450 = vmatprep.subr.mxu0 %v419
        %451 = vmatpush1.xpose.msra.mxu0 %v418
        %452 = vmatprep.subr.mxu0 %v421
        %453 = vmatpush1.xpose.msra.mxu0 %v420
        %454 = vmatprep.subr.mxu0 %v423
        %455 = vmatpush1.xpose.msra.mxu0 %v422
        %456 = vmatprep.subr.mxu0 %v425
        %457 = vmatpush1.xpose.msra.mxu0 %v424
        %458 = vmatprep.subr.mxu0 0.0
        %459 = vmatpush1.xpose.msra.mxu0 0.0
        %460 = vmatprep.subr.mxu0 0.0
        %461 = vmatpush1.xpose.msra.mxu0 0.0
        %462 = vmatprep.subr.mxu0 0.0
        %463 = vmatpush1.xpose.msra.mxu0 0.0
        %464 = vmatprep.subr.mxu0 0.0
        %465 = vmatpush1.xpose.msra.mxu0 0.0
        %466 = vmatprep.subr.mxu0 0.0
        %467 = vmatpush1.xpose.msra.mxu0 0.0
        %468 = vmatprep.subr.mxu0 0.0
        %469 = vmatpush1.xpose.msra.mxu0 0.0
        %470 = vmatprep.subr.mxu0 0.0
        %471 = vmatpush1.xpose.msra.mxu0 0.0
        %472 = vmatprep.subr.mxu0 0.0
        %473 = vmatpush1.xpose.msra.mxu0 0.0
        %474 = vmatprep.subr.mxu0 0.0
        %475 = vmatpush1.xpose.msra.mxu0 0.0
        %476 = vmatprep.subr.mxu0 0.0
        %477 = vmatpush1.xpose.msra.mxu0 0.0
        %478 = vmatprep.subr.mxu0 0.0
        %479 = vmatpush1.xpose.msra.mxu0 0.0
        %480 = vmatprep.subr.mxu0 0.0
        %481 = vmatpush1.xpose.msra.mxu0 0.0
        %482 = vmatprep.subr.mxu0 0.0
        %483 = vmatpush1.xpose.msra.mxu0 0.0
        %484 = vmatprep.subr.mxu0 0.0
        %485 = vmatpush1.xpose.msra.mxu0 0.0
        %486 = vmatprep.subr.mxu0 0.0
        %487 = vmatpush1.xpose.msra.mxu0 0.0
        %488 = vmatprep.subr.mxu0 0.0
        %489 = vmatpush1.xpose.msra.mxu0 0.0
        %490 = vmatprep.mubr.f32.mxu0 %v391
        %491 = vmatmul.mubr.f32.gmra.mrb[0].mxu0 %v390
        %v492 = vpop.f32.mrb[0].mxu0
        %v493 = vadd.f32 0.0, %v492
        %v494 = vpop.f32.mrb[0].mxu0
        %495 = vmatprep.mubr.f32.mxu0 %v393
        %496 = vmatmul.mubr.f32.gmra.mrb[0].mxu0 %v392
        %v497 = vpop.f32.mrb[0].mxu0
        %v498 = vadd.f32 0.0, %v497
        %v499 = vpop.f32.mrb[0].mxu0
        %500 = vdwg.mxu0
        %v501 = vld [vmem:[%s300] sm:$0xff]
        %v502 = vld [vmem:[%s300 + $0x8] sm:$0xff]
        %v503 = vld [vmem:[%s300 + $0x10] sm:$0xff]
        %v504 = vld [vmem:[%s300 + $0x18] sm:$0xff]
        %v505 = vld [vmem:[%s300 + $0x20] sm:$0xff]
        %v506 = vld [vmem:[%s300 + $0x28] sm:$0xff]
        %v507 = vld [vmem:[%s300 + $0x30] sm:$0xff]
        %v508 = vld [vmem:[%s300 + $0x38] sm:$0xff]
        %v509 = vld [vmem:[%s300 + $0x40] sm:$0xff]
        %v510 = vld [vmem:[%s300 + $0x48] sm:$0xff]
        %v511 = vld [vmem:[%s300 + $0x50] sm:$0xff]
        %v512 = vld [vmem:[%s300 + $0x58] sm:$0xff]
        %v513 = vld [vmem:[%s300 + $0x60] sm:$0xff]
        %v514 = vld [vmem:[%s300 + $0x68] sm:$0xff]
        %v515 = vld [vmem:[%s300 + $0x70] sm:$0xff]
        %v516 = vld [vmem:[%s300 + $0x78] sm:$0xff]
        %v517 = vld [vmem:[%s300 + $0x80] sm:$0xff]
        %v518 = vld [vmem:[%s300 + $0x88] sm:$0xff]
        %v519 = vld [vmem:[%s300 + $0x90] sm:$0xff]
        %v520 = vld [vmem:[%s300 + $0x98] sm:$0xff]
        %v521 = vld [vmem:[%s300 + $0xa0] sm:$0xff]
        %v522 = vld [vmem:[%s300 + $0xa8] sm:$0xff]
        %v523 = vld [vmem:[%s300 + $0xb0] sm:$0xff]
        %v524 = vld [vmem:[%s300 + $0xb8] sm:$0xff]
        %v525 = vld [vmem:[%s300 + $0xc0] sm:$0xff]
        %v526 = vld [vmem:[%s300 + $0xc8] sm:$0xff]
        %v527 = vld [vmem:[%s300 + $0xd0] sm:$0xff]
        %v528 = vld [vmem:[%s300 + $0xd8] sm:$0xff]
        %v529 = vld [vmem:[%s300 + $0xe0] sm:$0xff]
        %v530 = vld [vmem:[%s300 + $0xe8] sm:$0xff]
        %v531 = vld [vmem:[%s300 + $0xf0] sm:$0xff]
        %v532 = vld [vmem:[%s300 + $0xf8] sm:$0xff]
        %533 = vmatprep.subr.mxu0 %v502
        %534 = vmatpush1.xpose.msra.mxu0 %v501
        %535 = vmatprep.subr.mxu0 %v504
        %536 = vmatpush1.xpose.msra.mxu0 %v503
        %537 = vmatprep.subr.mxu0 %v506
        %538 = vmatpush1.xpose.msra.mxu0 %v505
        %539 = vmatprep.subr.mxu0 %v508
        %540 = vmatpush1.xpose.msra.mxu0 %v507
        %541 = vmatprep.subr.mxu0 %v510
        %542 = vmatpush1.xpose.msra.mxu0 %v509
        %543 = vmatprep.subr.mxu0 %v512
        %544 = vmatpush1.xpose.msra.mxu0 %v511
        %545 = vmatprep.subr.mxu0 %v514
        %546 = vmatpush1.xpose.msra.mxu0 %v513
        %547 = vmatprep.subr.mxu0 %v516
        %548 = vmatpush1.xpose.msra.mxu0 %v515
        %549 = vmatprep.subr.mxu0 %v518
        %550 = vmatpush1.xpose.msra.mxu0 %v517
        %551 = vmatprep.subr.mxu0 %v520
        %552 = vmatpush1.xpose.msra.mxu0 %v519
        %553 = vmatprep.subr.mxu0 %v522
        %554 = vmatpush1.xpose.msra.mxu0 %v521
        %555 = vmatprep.subr.mxu0 %v524
        %556 = vmatpush1.xpose.msra.mxu0 %v523
        %557 = vmatprep.subr.mxu0 %v526
        %558 = vmatpush1.xpose.msra.mxu0 %v525
        %559 = vmatprep.subr.mxu0 %v528
        %560 = vmatpush1.xpose.msra.mxu0 %v527
        %561 = vmatprep.subr.mxu0 %v530
        %562 = vmatpush1.xpose.msra.mxu0 %v529
        %563 = vmatprep.subr.mxu0 %v532
        %564 = vmatpush1.xpose.msra.mxu0 %v531
        %565 = vmatprep.subr.mxu0 0.0
        %566 = vmatpush1.xpose.msra.mxu0 0.0
        %567 = vmatprep.subr.mxu0 0.0
        %568 = vmatpush1.xpose.msra.mxu0 0.0
        %569 = vmatprep.subr.mxu0 0.0
        %570 = vmatpush1.xpose.msra.mxu0 0.0
        %571 = vmatprep.subr.mxu0 0.0
        %572 = vmatpush1.xpose.msra.mxu0 0.0
        %573 = vmatprep.subr.mxu0 0.0
        %574 = vmatpush1.xpose.msra.mxu0 0.0
        %575 = vmatprep.subr.mxu0 0.0
        %576 = vmatpush1.xpose.msra.mxu0 0.0
        %577 = vmatprep.subr.mxu0 0.0
        %578 = vmatpush1.xpose.msra.mxu0 0.0
        %579 = vmatprep.subr.mxu0 0.0
        %580 = vmatpush1.xpose.msra.mxu0 0.0
        %581 = vmatprep.subr.mxu0 0.0
        %582 = vmatpush1.xpose.msra.mxu0 0.0
        %583 = vmatprep.subr.mxu0 0.0
        %584 = vmatpush1.xpose.msra.mxu0 0.0
        %585 = vmatprep.subr.mxu0 0.0
        %586 = vmatpush1.xpose.msra.mxu0 0.0
        %587 = vmatprep.subr.mxu0 0.0
        %588 = vmatpush1.xpose.msra.mxu0 0.0
        %589 = vmatprep.subr.mxu0 0.0
        %590 = vmatpush1.xpose.msra.mxu0 0.0
        %591 = vmatprep.subr.mxu0 0.0
        %592 = vmatpush1.xpose.msra.mxu0 0.0
        %593 = vmatprep.subr.mxu0 0.0
        %594 = vmatpush1.xpose.msra.mxu0 0.0
        %595 = vmatprep.subr.mxu0 0.0
        %596 = vmatpush1.xpose.msra.mxu0 0.0
        %597 = vmatprep.mubr.f32.mxu0 %v391
        %598 = vmatmul.mubr.f32.gmra.mrb[0].mxu0 %v390
        %v599 = vpop.f32.mrb[0].mxu0
        %v600 = vadd.f32 0.0, %v599
        %v601 = vpop.f32.mrb[0].mxu0
        %602 = vmatprep.mubr.f32.mxu0 %v393
        %603 = vmatmul.mubr.f32.gmra.mrb[0].mxu0 %v392
        %v604 = vpop.f32.mrb[0].mxu0
        %v605 = vadd.f32 0.0, %v604
        %v606 = vpop.f32.mrb[0].mxu0
        %607 = vdwg.mxu0
        %v608 = vxor.u32 %v493, 2147483648
        %v609 = vxor.u32 %v498, 2147483648
        %v610 = vmul.f32 %v608, 1.442695
        %v611 = vpow.pop %v610
        %v612 = vmul.f32 %v609, 1.442695
        %v613 = vpow.pop %v612
        %v614 = vadd.f32 %v611, 1.0
        %v615 = vadd.f32 %v613, 1.0
        %v616 = vrcp.pop %v614
        %v617 = vmul.f32 1.0, %v616
        %v618 = vrcp.pop %v615
        %v619 = vmul.f32 1.0, %v618
        %v620 = vmul.f32 %v493, %v617
        %v621 = vmul.f32 %v498, %v619
        %v622 = vmul.f32 %v620, %v600
        %v623 = vmul.f32 %v621, %v605
        %v624 = vld [vmem:[#allocation2] sm:$0xff]
        %v625 = vld [vmem:[#allocation2 + $0x8] sm:$0xff]
        %v626 = vld [vmem:[#allocation2 + $0x10] sm:$0xff]
        %v627 = vld [vmem:[#allocation2 + $0x18] sm:$0xff]
        %v628 = vld [vmem:[%s309] sm:$0xff]
        %v629 = vld [vmem:[%s309 + $0x8] sm:$0xff]
        %v630 = vld [vmem:[%s309 + $0x10] sm:$0xff]
        %v631 = vld [vmem:[%s309 + $0x18] sm:$0xff]
        %v632 = vld [vmem:[%s309 + $0x20] sm:$0xff]
        %v633 = vld [vmem:[%s309 + $0x28] sm:$0xff]
        %v634 = vld [vmem:[%s309 + $0x30] sm:$0xff]
        %v635 = vld [vmem:[%s309 + $0x38] sm:$0xff]
        %v636 = vld [vmem:[%s309 + $0x40] sm:$0xff]
        %v637 = vld [vmem:[%s309 + $0x48] sm:$0xff]
        %v638 = vld [vmem:[%s309 + $0x50] sm:$0xff]
        %v639 = vld [vmem:[%s309 + $0x58] sm:$0xff]
        %v640 = vld [vmem:[%s309 + $0x60] sm:$0xff]
        %v641 = vld [vmem:[%s309 + $0x68] sm:$0xff]
        %v642 = vld [vmem:[%s309 + $0x70] sm:$0xff]
        %v643 = vld [vmem:[%s309 + $0x78] sm:$0xff]
        %v644 = vld [vmem:[%s309 + $0x80] sm:$0xff]
        %v645 = vld [vmem:[%s309 + $0x88] sm:$0xff]
        %v646 = vld [vmem:[%s309 + $0x90] sm:$0xff]
        %v647 = vld [vmem:[%s309 + $0x98] sm:$0xff]
        %v648 = vld [vmem:[%s309 + $0xa0] sm:$0xff]
        %v649 = vld [vmem:[%s309 + $0xa8] sm:$0xff]
        %v650 = vld [vmem:[%s309 + $0xb0] sm:$0xff]
        %v651 = vld [vmem:[%s309 + $0xb8] sm:$0xff]
        %v652 = vld [vmem:[%s309 + $0xc0] sm:$0xff]
        %v653 = vld [vmem:[%s309 + $0xc8] sm:$0xff]
        %v654 = vld [vmem:[%s309 + $0xd0] sm:$0xff]
        %v655 = vld [vmem:[%s309 + $0xd8] sm:$0xff]
        %v656 = vld [vmem:[%s309 + $0xe0] sm:$0xff]
        %v657 = vld [vmem:[%s309 + $0xe8] sm:$0xff]
        %v658 = vld [vmem:[%s309 + $0xf0] sm:$0xff]
        %v659 = vld [vmem:[%s309 + $0xf8] sm:$0xff]
        %660 = vmatprep.subr.mxu0 %v629
        %661 = vmatpush1.msra.mxu0 %v628
        %662 = vmatprep.subr.mxu0 %v631
        %663 = vmatpush1.msra.mxu0 %v630
        %664 = vmatprep.subr.mxu0 %v633
        %665 = vmatpush1.msra.mxu0 %v632
        %666 = vmatprep.subr.mxu0 %v635
        %667 = vmatpush1.msra.mxu0 %v634
        %668 = vmatprep.subr.mxu0 %v637
        %669 = vmatpush1.msra.mxu0 %v636
        %670 = vmatprep.subr.mxu0 %v639
        %671 = vmatpush1.msra.mxu0 %v638
        %672 = vmatprep.subr.mxu0 %v641
        %673 = vmatpush1.msra.mxu0 %v640
        %674 = vmatprep.subr.mxu0 %v643
        %675 = vmatpush1.msra.mxu0 %v642
        %676 = vmatprep.subr.mxu0 %v645
        %677 = vmatpush1.msra.mxu0 %v644
        %678 = vmatprep.subr.mxu0 %v647
        %679 = vmatpush1.msra.mxu0 %v646
        %680 = vmatprep.subr.mxu0 %v649
        %681 = vmatpush1.msra.mxu0 %v648
        %682 = vmatprep.subr.mxu0 %v651
        %683 = vmatpush1.msra.mxu0 %v650
        %684 = vmatprep.subr.mxu0 %v653
        %685 = vmatpush1.msra.mxu0 %v652
        %686 = vmatprep.subr.mxu0 %v655
        %687 = vmatpush1.msra.mxu0 %v654
        %688 = vmatprep.subr.mxu0 %v657
        %689 = vmatpush1.msra.mxu0 %v656
        %690 = vmatprep.subr.mxu0 %v659
        %691 = vmatpush1.msra.mxu0 %v658
        %692 = vmatprep.subr.mxu0 0.0
        %693 = vmatpush1.msra.mxu0 0.0
        %694 = vmatprep.subr.mxu0 0.0
        %695 = vmatpush1.msra.mxu0 0.0
        %696 = vmatprep.subr.mxu0 0.0
        %697 = vmatpush1.msra.mxu0 0.0
        %698 = vmatprep.subr.mxu0 0.0
        %699 = vmatpush1.msra.mxu0 0.0
        %700 = vmatprep.subr.mxu0 0.0
        %701 = vmatpush1.msra.mxu0 0.0
        %702 = vmatprep.subr.mxu0 0.0
        %703 = vmatpush1.msra.mxu0 0.0
        %704 = vmatprep.subr.mxu0 0.0
        %705 = vmatpush1.msra.mxu0 0.0
        %706 = vmatprep.subr.mxu0 0.0
        %707 = vmatpush1.msra.mxu0 0.0
        %708 = vmatprep.subr.mxu0 0.0
        %709 = vmatpush1.msra.mxu0 0.0
        %710 = vmatprep.subr.mxu0 0.0
        %711 = vmatpush1.msra.mxu0 0.0
        %712 = vmatprep.subr.mxu0 0.0
        %713 = vmatpush1.msra.mxu0 0.0
        %714 = vmatprep.subr.mxu0 0.0
        %715 = vmatpush1.msra.mxu0 0.0
        %716 = vmatprep.subr.mxu0 0.0
        %717 = vmatpush1.msra.mxu0 0.0
        %718 = vmatprep.subr.mxu0 0.0
        %719 = vmatpush1.msra.mxu0 0.0
        %720 = vmatprep.subr.mxu0 0.0
        %721 = vmatpush1.msra.mxu0 0.0
        %722 = vmatprep.subr.mxu0 0.0
        %723 = vmatpush1.msra.mxu0 0.0
        %724 = vmatprep.mubr.f32.mxu0 0.0
        %725 = vmatmul.mubr.f32.gmra.mrb[0].mxu0 %v622
        %v726 = vpop.f32.mrb[0].mxu0
        %v727 = vadd.f32 0.0, %v726
        %v728 = vpop.f32.mrb[0].mxu0
        %v729 = vadd.f32 0.0, %v728
        %730 = vmatprep.mubr.f32.mxu0 0.0
        %731 = vmatmul.mubr.f32.gmra.mrb[0].mxu0 %v623
        %v732 = vpop.f32.mrb[0].mxu0
        %v733 = vadd.f32 0.0, %v732
        %v734 = vpop.f32.mrb[0].mxu0
        %v735 = vadd.f32 0.0, %v734
        %736 = vdwg.mxu0
        %v737 = vadd.f32 %v624, %v727
        %v738 = vadd.f32 %v625, %v729
        %v739 = vadd.f32 %v626, %v733
        %v740 = vadd.f32 %v627, %v735
        %741 = vst [vmem:[#allocation2] sm:$0xff] %v737
        %742 = vst [vmem:[#allocation2 + $0x8] sm:$0xff] %v738
        %743 = vst [vmem:[#allocation2 + $0x10] sm:$0xff] %v739
        %744 = vst [vmem:[#allocation2 + $0x18] sm:$0xff] %v740
        %p745 = scmp.eq.s32.totalorder %s28, 3
        // Predicated region
        $region53: #{dbrx_expert_glu.1} parent=35 // pred_check
          %p746 = pneg %p745
        $region54: #{dbrx_expert_glu.1} parent=35 // pred_check_branch
          %748 = sbr.rel (%p746) target = $region56
        $region55: #{dbrx_expert_glu.1} parent=35 // pred_region
          %v749 = vld [vmem:[#allocation2] sm:$0xff]
          %v750 = vld [vmem:[#allocation2 + $0x8] sm:$0xff]
          %v751 = vld [vmem:[#allocation2 + $0x10] sm:$0xff]
          %v752 = vld [vmem:[#allocation2 + $0x18] sm:$0xff]
          %753 = vst [vmem:[%s380] sm:$0xff] %v749
          %754 = vst [vmem:[%s380 + $0x8] sm:$0xff] %v750
          %755 = vst [vmem:[%s380 + $0x10] sm:$0xff] %v751
          %756 = vst [vmem:[%s380 + $0x18] sm:$0xff] %v752
        $region56: #{dbrx_expert_glu.1} parent=35 // pred_fallthru
          _
        %s757 = smul.u32 2, %s27
        %p758 = scmp.lt.s32.totalorder %s26, 0
        %s759 = scalar_select %p758, %s26, 0
        %p760 = scmp.lt.s32.totalorder %s757, 5
        %s761 = scalar_select %p760, %s757, 5
        %s762 = smul.addr %s761, 2
        %s763 = smul.addr %s759, 12
        %s764 = sadd.s32 %s762, %s763
        %s765 = smul.addr %s764, 8
        %s766 = scalar_lea.vmem %s4, %s765
        // Predicated region
        $region57: #{dbrx_expert_glu.1} parent=35 // pred_check
          %p767 = pneg %p176
        $region58: #{dbrx_expert_glu.1} parent=35 // pred_check_branch
          %769 = sbr.rel (%p767) target = $region60
        $region59: #{dbrx_expert_glu.1} parent=35 // pred_region
          %s770 = smul.u32 2, %s27
        $region60: #{dbrx_expert_glu.1} parent=35 // pred_fallthru
          _
      $region36: #{dbrx_expert_glu.1} parent=5 // pred_fallthru
        _
      %p771 = scmp.le.s32.totalorder 2, %s16
      // Predicated region
      $region61: #{dbrx_expert_glu.1} parent=5 // pred_check
        %p772 = pneg %p771
      $region62: #{dbrx_expert_glu.1} parent=5 // pred_check_branch
        %774 = sbr.rel (%p772) target = $region64
      $region63: #{dbrx_expert_glu.1} parent=5 // pred_region
        %s775 = ssub.s32 %s16, 2
        // Predicated region
        $region65: #{dbrx_expert_glu.1} parent=63 // pred_check
          %p776 = pneg %p182
        $region66: #{dbrx_expert_glu.1} parent=63 // pred_check_branch
          %778 = sbr.rel (%p776) target = $region68
        $region67: #{dbrx_expert_glu.1} parent=63 // pred_region
          %s779 = smul.u32 2, %s30
          %p780 = scmp.lt.s32.totalorder %s29, 0
          %s781 = scalar_select %p780, %s29, 0
          %p782 = scmp.lt.s32.totalorder %s779, 5
          %s783 = scalar_select %p782, %s779, 5
          %s784 = smul.addr %s783, 2
          %s785 = smul.addr %s781, 12
          %s786 = sadd.s32 %s784, %s785
          %s787 = smul.addr %s786, 8
          %s788 = scalar_lea.vmem %s4, %s787
        $region68: #{dbrx_expert_glu.1} parent=63 // pred_fallthru
          _
      $region64: #{dbrx_expert_glu.1} parent=5 // pred_fallthru
        _
    $region6: #{dbrx_expert_glu.1} parent=1 // loop_footer
      %s20 = sadd.s32 1, %s16
    $region7: #{dbrx_expert_glu.1} parent=1 // loop_footer_branch
      %15 = sbr.rel target = $region3
    $region8: #{dbrx_expert_glu.1} parent=1 // loop_exit
      _
    %789 = vsyncpa [#allocation4], 1
    %s790 = scalar_lea.sflag [#allocation4], 1
    %791 = vsyncpa %s790, 1
    %792 = vsyncpa [#allocation6], 1
    %s793 = scalar_lea.sflag [#allocation6], 1
    %794 = vsyncpa %s793, 1

</llo_original>
